<compile_context>
chip_gen: v7x
topology: tpu7x:2x2x1
jax: 0.10.0
libtpu: 0.0.40
codegen_flags: <defaults>
</compile_context>

<pallas_src>
import functools
import math

import jax
import jax.numpy as jnp
from jax.experimental import pallas as pl
from jax.experimental.pallas import tpu as pltpu


def _self_attn_kernel(x_ref, wqkv_ref, wo_ref, out_ref, attn_ref, ctx_ref,
                      *, num_heads, head_dim, scale, compute_dtype):
    x = x_ref[0]                                 # (S, E)
    S, E = x.shape
    H, D = num_heads, head_dim

    # Fused QKV projection: one MXU matmul, weights already (E, 3E) "in,out".
    qkv = jnp.dot(x, wqkv_ref[...], preferred_element_type=jnp.float32)  # (S, 3E)

    # Fold the 1/sqrt(D) scale into q (cheaper: (S,E) mul instead of (S,S)).
    q = (qkv[:, 0 * E:1 * E] * scale).astype(compute_dtype)
    k = qkv[:, 1 * E:2 * E].astype(compute_dtype)
    v = qkv[:, 2 * E:3 * E].astype(compute_dtype)

    # Per-head attention without any head transposes: head h uses the
    # contiguous column block [h*D, (h+1)*D). Static slices -> no XLU permutes.
    for h in range(H):                            # static unroll (H is small)
        q_h = q[:, h * D:(h + 1) * D]             # (S, D)
        k_h = k[:, h * D:(h + 1) * D]             # (S, D)
        v_h = v[:, h * D:(h + 1) * D]             # (S, D)

        # scores = q_h @ k_h^T, f32 accumulation on the MXU.
        scores = jax.lax.dot_general(
            q_h, k_h, (((1,), (1,)), ((), ())),
            preferred_element_type=jnp.float32)   # (S, S)

        # Numerically stable softmax; reciprocal goes to the EUP slot.
        m = jnp.max(scores, axis=-1, keepdims=True)
        e = jnp.exp(scores - m)
        denom = jnp.sum(e, axis=-1, keepdims=True)
        inv = pl.reciprocal(denom, approx=True)
        attn_h = e * inv                          # (S, S), f32

        # Context for this head, f32 accumulation.
        ctx_h = jnp.dot(attn_h.astype(compute_dtype), v_h,
                        preferred_element_type=jnp.float32)  # (S, D)

        ctx_ref[:, h * D:(h + 1) * D] = ctx_h.astype(ctx_ref.dtype)
        attn_ref[0, h] = attn_h.astype(attn_ref.dtype)

    # Output projection: one (S,E)x(E,E) matmul from the assembled context.
    out = jnp.dot(ctx_ref[...], wo_ref[...], preferred_element_type=jnp.float32)
    out_ref[0] = out.astype(out_ref.dtype)

    # TODO(synk): optional `mask` argument of the PyTorch forward (mask == 0 ->
    # -inf before softmax) is not wired into the kernel; mask=None semantics.


def self_attn(x, wq, wk, wv, wo, num_heads, *, compute_dtype=None,
              attn_dtype=None):
    """x: (B, S, E). Weights: (E, E) in PyTorch (out, in) layout.

    Returns (output (B, S, E), attn_weights (B, H, S, S)).
    Pass bf16 x / weights (or compute_dtype=jnp.bfloat16) for real workloads;
    accumulation is always f32.
    """
    B, S, E = x.shape
    H = num_heads
    D = E // H
    assert E % H == 0, "embed_dim must be divisible by num_heads"
    scale = D ** (-0.5)

    compute_dtype = compute_dtype or x.dtype
    attn_dtype = attn_dtype or x.dtype

    # One-time wrapper-side layout work (NOT repeated per grid step):
    # PyTorch Linear is y = x @ W.T, so pre-transpose to (in, out) and fuse
    # Wq/Wk/Wv into a single (E, 3E) matrix.
    w_qkv = jnp.concatenate([wq.T, wk.T, wv.T], axis=1).astype(compute_dtype)
    wo_t = wo.T.astype(compute_dtype)
    x_c = x.astype(compute_dtype)

    kernel = functools.partial(
        _self_attn_kernel,
        num_heads=H, head_dim=D, scale=scale, compute_dtype=compute_dtype)

    # Rough per-step VMEM budget (double-buffered I/O + resident weights +
    # scratch); clamp below v7x's 64 MiB physical VMEM.
    isz = jnp.dtype(compute_dtype).itemsize
    est = (2 * (S * E * isz                                   # x block
               + S * E * jnp.dtype(x.dtype).itemsize          # out block
               + H * S * S * jnp.dtype(attn_dtype).itemsize)  # attn block
           + (3 * E * E + E * E) * isz                        # resident weights
           + S * E * isz)                                     # ctx scratch
    vmem_limit = int(min(max(2 * est, 32 * 1024 * 1024), 48 * 1024 * 1024))

    out, attn = pl.pallas_call(
        kernel,
        out_shape=(
            jax.ShapeDtypeStruct((B, S, E), x.dtype),
            jax.ShapeDtypeStruct((B, H, S, S), attn_dtype),
        ),
        grid_spec=pltpu.PrefetchScalarGridSpec(
            num_scalar_prefetch=0,
            grid=(B,),
            in_specs=[
                pl.BlockSpec((1, S, E), lambda b: (b, 0, 0)),
                # Constant index_map -> weights stay resident, no re-DMA.
                pl.BlockSpec((E, 3 * E), lambda b: (0, 0)),
                pl.BlockSpec((E, E), lambda b: (0, 0)),
            ],
            out_specs=[
                pl.BlockSpec((1, S, E), lambda b: (b, 0, 0)),
                pl.BlockSpec((1, H, S, S), lambda b: (b, 0, 0, 0)),
            ],
            scratch_shapes=[pltpu.VMEM((S, E), compute_dtype)],
        ),
        compiler_params=pltpu.CompilerParams(
            dimension_semantics=("parallel",),
            vmem_limit_bytes=vmem_limit),
    )(x_c, w_qkv, wo_t)
    return out, attn


def _reference(x, wq, wk, wv, wo, num_heads):
    B, S, E = x.shape
    H = num_heads
    D = E // H
    q = (x @ wq.T).reshape(B, S, H, D).transpose(0, 2, 1, 3)
    k = (x @ wk.T).reshape(B, S, H, D).transpose(0, 2, 1, 3)
    v = (x @ wv.T).reshape(B, S, H, D).transpose(0, 2, 1, 3)
    scores = jnp.einsum('bhqd,bhkd->bhqk', q, k) * (D ** -0.5)
    attn = jax.nn.softmax(scores, axis=-1)
    ctx = jnp.einsum('bhqk,bhkd->bhqd', attn, v)
    ctx = ctx.transpose(0, 2, 1, 3).reshape(B, S, E)
    return ctx @ wo.T, attn


if __name__ == "__main__":
    # Small shapes consistent with the module.
    batch, seq, embed_dim, num_heads = 2, 8, 32, 4

    key = jax.random.PRNGKey(0)
    kx, kq, kk, kv, ko = jax.random.split(key, 5)

    bound = 1.0 / math.sqrt(embed_dim)
    x = jax.random.normal(kx, (batch, seq, embed_dim), dtype=jnp.float32)
    wq = jax.random.uniform(kq, (embed_dim, embed_dim), jnp.float32, -bound, bound)
    wk = jax.random.uniform(kk, (embed_dim, embed_dim), jnp.float32, -bound, bound)
    wv = jax.random.uniform(kv, (embed_dim, embed_dim), jnp.float32, -bound, bound)
    wo = jax.random.uniform(ko, (embed_dim, embed_dim), jnp.float32, -bound, bound)

    # f32 path: correctness vs reference (tolerance covers the EUP approx
    # reciprocal used in the softmax normalization).
    out, attn = self_attn(x, wq, wk, wv, wo, num_heads)
    out = jax.block_until_ready(out)
    attn = jax.block_until_ready(attn)

    ref_out, ref_attn = _reference(x, wq, wk, wv, wo, num_heads)
    assert out.shape == (batch, seq, embed_dim)
    assert attn.shape == (batch, num_heads, seq, seq)
    assert jnp.allclose(out, ref_out, atol=2e-2, rtol=2e-2)
    assert jnp.allclose(attn, ref_attn, atol=2e-2, rtol=2e-2)

    # bf16 smoke test (real-workload path: bf16 operands, f32 accumulation).
    out_bf, attn_bf = self_attn(
        x.astype(jnp.bfloat16), wq.astype(jnp.bfloat16), wk.astype(jnp.bfloat16),
        wv.astype(jnp.bfloat16), wo.astype(jnp.bfloat16), num_heads)
    out_bf = jax.block_until_ready(out_bf)
    attn_bf = jax.block_until_ready(attn_bf)
    assert out_bf.dtype == jnp.bfloat16 and attn_bf.dtype == jnp.bfloat16
    assert bool(jnp.all(jnp.isfinite(out_bf.astype(jnp.float32))))

    print("KERNEL_OK")
</pallas_src>

<mosaic_0001>
module attributes {stable_mosaic.version = 11 : i64} {
  func.func @_self_attn_kernel(%arg0: i32, %arg1: memref<1x8x32xf32, #tpu.memory_space<vmem>>, %arg2: memref<32x96xf32, #tpu.memory_space<vmem>>, %arg3: memref<32x32xf32, #tpu.memory_space<vmem>>, %arg4: memref<1x8x32xf32, #tpu.memory_space<vmem>>, %arg5: memref<1x4x8x8xf32, #tpu.memory_space<vmem>>, %arg6: memref<8x32xf32, #tpu.memory_space<vmem>>) attributes {dimension_semantics = [#tpu.dimension_semantics<parallel>], iteration_bounds = array<i64: 2>, scalar_prefetch = 0 : i64, scratch_operands = 1 : i64, tpu.core_type = #tpu.core_type<tc>, window_params = [{transform_indices = @transform_0, window_bounds = array<i64: 1, 8, 32>}, {pipeline_mode = #tpu.pipeline_mode<synchronous>, transform_indices = @transform_1, window_bounds = array<i64: 32, 96>}, {pipeline_mode = #tpu.pipeline_mode<synchronous>, transform_indices = @transform_2, window_bounds = array<i64: 32, 32>}, {transform_indices = @transform_3, window_bounds = array<i64: 1, 8, 32>}, {transform_indices = @transform_4, window_bounds = array<i64: 1, 4, 8, 8>}]} {
    %c0 = arith.constant 0 : index
    %c0_0 = arith.constant 0 : index
    %c0_1 = arith.constant 0 : index
    %0 = vector.load %arg1[%c0, %c0_0, %c0_1] : memref<1x8x32xf32, #tpu.memory_space<vmem>>, vector<1x8x32xf32>
    %1 = vector.shape_cast %0 : vector<1x8x32xf32> to vector<8x32xf32>
    %c0_2 = arith.constant 0 : index
    %c0_3 = arith.constant 0 : index
    %2 = vector.load %arg2[%c0_2, %c0_3] : memref<32x96xf32, #tpu.memory_space<vmem>>, vector<32x96xf32>
    %cst = arith.constant dense<0.000000e+00> : vector<8x96xf32>
    %3 = tpu.matmul %1, %2, %cst {dimension_numbers = #tpu.dot_dimension_numbers<[1], [0], [0], [1], [0, 0, 1, 1], [], []>} : vector<8x32xf32>, vector<32x96xf32>, vector<8x96xf32> -> vector<8x96xf32>
    %4 = vector.extract_strided_slice %3 {offsets = [0, 0], sizes = [8, 32], strides = [1, 1]} : vector<8x96xf32> to vector<8x32xf32>
    %cst_4 = arith.constant 0.353553385 : f32
    %5 = vector.broadcast %cst_4 : f32 to vector<8x32xf32>
    %6 = arith.mulf %4, %5 : vector<8x32xf32>
    %7 = vector.extract_strided_slice %3 {offsets = [0, 32], sizes = [8, 32], strides = [1, 1]} : vector<8x96xf32> to vector<8x32xf32>
    %8 = vector.extract_strided_slice %3 {offsets = [0, 64], sizes = [8, 32], strides = [1, 1]} : vector<8x96xf32> to vector<8x32xf32>
    %9 = vector.extract_strided_slice %6 {offsets = [0, 0], sizes = [8, 8], strides = [1, 1]} : vector<8x32xf32> to vector<8x8xf32>
    %10 = vector.extract_strided_slice %7 {offsets = [0, 0], sizes = [8, 8], strides = [1, 1]} : vector<8x32xf32> to vector<8x8xf32>
    %11 = vector.extract_strided_slice %8 {offsets = [0, 0], sizes = [8, 8], strides = [1, 1]} : vector<8x32xf32> to vector<8x8xf32>
    %cst_5 = arith.constant dense<0.000000e+00> : vector<8x8xf32>
    %12 = tpu.matmul %9, %10, %cst_5 {dimension_numbers = #tpu.dot_dimension_numbers<[1], [1], [0], [0], [0, 0, 1, 0], [], []>} : vector<8x8xf32>, vector<8x8xf32>, vector<8x8xf32> -> vector<8x8xf32>
    %cst_6 = arith.constant dense<0xFF800000> : vector<8xf32>
    %13 = vector.multi_reduction <maximumf>, %12, %cst_6 [1] : vector<8x8xf32> to vector<8xf32>
    %14 = vector.shape_cast %13 : vector<8xf32> to vector<8x1xf32>
    %15 = vector.broadcast %14 : vector<8x1xf32> to vector<8x8xf32>
    %16 = arith.subf %12, %15 : vector<8x8xf32>
    %17 = math.exp %16 : vector<8x8xf32>
    %cst_7 = arith.constant dense<0.000000e+00> : vector<8xf32>
    %18 = vector.multi_reduction <add>, %17, %cst_7 [1] : vector<8x8xf32> to vector<8xf32>
    %19 = vector.shape_cast %18 : vector<8xf32> to vector<8x1xf32>
    %20 = tpu.reciprocal %19 {approx = true} : vector<8x1xf32> -> vector<8x1xf32>
    %21 = vector.broadcast %20 : vector<8x1xf32> to vector<8x8xf32>
    %22 = arith.mulf %17, %21 : vector<8x8xf32>
    %cst_8 = arith.constant dense<0.000000e+00> : vector<8x8xf32>
    %23 = tpu.matmul %22, %11, %cst_8 {dimension_numbers = #tpu.dot_dimension_numbers<[1], [0], [0], [1], [0, 0, 1, 1], [], []>} : vector<8x8xf32>, vector<8x8xf32>, vector<8x8xf32> -> vector<8x8xf32>
    %c0_9 = arith.constant 0 : index
    %c0_10 = arith.constant 0 : index
    %24 = vector.load %arg6[%c0_9, %c0_10] : memref<8x32xf32, #tpu.memory_space<vmem>>, vector<8x8xf32>
    tpu.vector_store %arg6[%c0_9, %c0_10], %23 {strides = array<i32>} : memref<8x32xf32, #tpu.memory_space<vmem>>, vector<8x8xf32>,
    %c0_11 = arith.constant 0 : index
    %c0_12 = arith.constant 0 : index
    %c0_13 = arith.constant 0 : index
    %c0_14 = arith.constant 0 : index
    %25 = vector.load %arg5[%c0_11, %c0_12, %c0_13, %c0_14] : memref<1x4x8x8xf32, #tpu.memory_space<vmem>>, vector<1x1x8x8xf32>
    %26 = vector.shape_cast %25 : vector<1x1x8x8xf32> to vector<8x8xf32>
    %27 = vector.shape_cast %22 : vector<8x8xf32> to vector<1x1x8x8xf32>
    tpu.vector_store %arg5[%c0_11, %c0_12, %c0_13, %c0_14], %27 {strides = array<i32>} : memref<1x4x8x8xf32, #tpu.memory_space<vmem>>, vector<1x1x8x8xf32>,
    %28 = vector.extract_strided_slice %6 {offsets = [0, 8], sizes = [8, 8], strides = [1, 1]} : vector<8x32xf32> to vector<8x8xf32>
    %29 = vector.extract_strided_slice %7 {offsets = [0, 8], sizes = [8, 8], strides = [1, 1]} : vector<8x32xf32> to vector<8x8xf32>
    %30 = vector.extract_strided_slice %8 {offsets = [0, 8], sizes = [8, 8], strides = [1, 1]} : vector<8x32xf32> to vector<8x8xf32>
    %cst_15 = arith.constant dense<0.000000e+00> : vector<8x8xf32>
    %31 = tpu.matmul %28, %29, %cst_15 {dimension_numbers = #tpu.dot_dimension_numbers<[1], [1], [0], [0], [0, 0, 1, 0], [], []>} : vector<8x8xf32>, vector<8x8xf32>, vector<8x8xf32> -> vector<8x8xf32>
    %cst_16 = arith.constant dense<0xFF800000> : vector<8xf32>
    %32 = vector.multi_reduction <maximumf>, %31, %cst_16 [1] : vector<8x8xf32> to vector<8xf32>
    %33 = vector.shape_cast %32 : vector<8xf32> to vector<8x1xf32>
    %34 = vector.broadcast %33 : vector<8x1xf32> to vector<8x8xf32>
    %35 = arith.subf %31, %34 : vector<8x8xf32>
    %36 = math.exp %35 : vector<8x8xf32>
    %cst_17 = arith.constant dense<0.000000e+00> : vector<8xf32>
    %37 = vector.multi_reduction <add>, %36, %cst_17 [1] : vector<8x8xf32> to vector<8xf32>
    %38 = vector.shape_cast %37 : vector<8xf32> to vector<8x1xf32>
    %39 = tpu.reciprocal %38 {approx = true} : vector<8x1xf32> -> vector<8x1xf32>
    %40 = vector.broadcast %39 : vector<8x1xf32> to vector<8x8xf32>
    %41 = arith.mulf %36, %40 : vector<8x8xf32>
    %cst_18 = arith.constant dense<0.000000e+00> : vector<8x8xf32>
    %42 = tpu.matmul %41, %30, %cst_18 {dimension_numbers = #tpu.dot_dimension_numbers<[1], [0], [0], [1], [0, 0, 1, 1], [], []>} : vector<8x8xf32>, vector<8x8xf32>, vector<8x8xf32> -> vector<8x8xf32>
    %c0_19 = arith.constant 0 : index
    %c8 = arith.constant 8 : index
    %43 = vector.load %arg6[%c0_19, %c8] : memref<8x32xf32, #tpu.memory_space<vmem>>, vector<8x8xf32>
    tpu.vector_store %arg6[%c0_19, %c8], %42 {strides = array<i32>} : memref<8x32xf32, #tpu.memory_space<vmem>>, vector<8x8xf32>,
    %c0_20 = arith.constant 0 : index
    %c1 = arith.constant 1 : index
    %c0_21 = arith.constant 0 : index
    %c0_22 = arith.constant 0 : index
    %44 = vector.load %arg5[%c0_20, %c1, %c0_21, %c0_22] : memref<1x4x8x8xf32, #tpu.memory_space<vmem>>, vector<1x1x8x8xf32>
    %45 = vector.shape_cast %44 : vector<1x1x8x8xf32> to vector<8x8xf32>
    %46 = vector.shape_cast %41 : vector<8x8xf32> to vector<1x1x8x8xf32>
    tpu.vector_store %arg5[%c0_20, %c1, %c0_21, %c0_22], %46 {strides = array<i32>} : memref<1x4x8x8xf32, #tpu.memory_space<vmem>>, vector<1x1x8x8xf32>,
    %47 = vector.extract_strided_slice %6 {offsets = [0, 16], sizes = [8, 8], strides = [1, 1]} : vector<8x32xf32> to vector<8x8xf32>
    %48 = vector.extract_strided_slice %7 {offsets = [0, 16], sizes = [8, 8], strides = [1, 1]} : vector<8x32xf32> to vector<8x8xf32>
    %49 = vector.extract_strided_slice %8 {offsets = [0, 16], sizes = [8, 8], strides = [1, 1]} : vector<8x32xf32> to vector<8x8xf32>
    %cst_23 = arith.constant dense<0.000000e+00> : vector<8x8xf32>
    %50 = tpu.matmul %47, %48, %cst_23 {dimension_numbers = #tpu.dot_dimension_numbers<[1], [1], [0], [0], [0, 0, 1, 0], [], []>} : vector<8x8xf32>, vector<8x8xf32>, vector<8x8xf32> -> vector<8x8xf32>
    %cst_24 = arith.constant dense<0xFF800000> : vector<8xf32>
    %51 = vector.multi_reduction <maximumf>, %50, %cst_24 [1] : vector<8x8xf32> to vector<8xf32>
    %52 = vector.shape_cast %51 : vector<8xf32> to vector<8x1xf32>
    %53 = vector.broadcast %52 : vector<8x1xf32> to vector<8x8xf32>
    %54 = arith.subf %50, %53 : vector<8x8xf32>
    %55 = math.exp %54 : vector<8x8xf32>
    %cst_25 = arith.constant dense<0.000000e+00> : vector<8xf32>
    %56 = vector.multi_reduction <add>, %55, %cst_25 [1] : vector<8x8xf32> to vector<8xf32>
    %57 = vector.shape_cast %56 : vector<8xf32> to vector<8x1xf32>
    %58 = tpu.reciprocal %57 {approx = true} : vector<8x1xf32> -> vector<8x1xf32>
    %59 = vector.broadcast %58 : vector<8x1xf32> to vector<8x8xf32>
    %60 = arith.mulf %55, %59 : vector<8x8xf32>
    %cst_26 = arith.constant dense<0.000000e+00> : vector<8x8xf32>
    %61 = tpu.matmul %60, %49, %cst_26 {dimension_numbers = #tpu.dot_dimension_numbers<[1], [0], [0], [1], [0, 0, 1, 1], [], []>} : vector<8x8xf32>, vector<8x8xf32>, vector<8x8xf32> -> vector<8x8xf32>
    %c0_27 = arith.constant 0 : index
    %c16 = arith.constant 16 : index
    %62 = vector.load %arg6[%c0_27, %c16] : memref<8x32xf32, #tpu.memory_space<vmem>>, vector<8x8xf32>
    tpu.vector_store %arg6[%c0_27, %c16], %61 {strides = array<i32>} : memref<8x32xf32, #tpu.memory_space<vmem>>, vector<8x8xf32>,
    %c0_28 = arith.constant 0 : index
    %c2 = arith.constant 2 : index
    %c0_29 = arith.constant 0 : index
    %c0_30 = arith.constant 0 : index
    %63 = vector.load %arg5[%c0_28, %c2, %c0_29, %c0_30] : memref<1x4x8x8xf32, #tpu.memory_space<vmem>>, vector<1x1x8x8xf32>
    %64 = vector.shape_cast %63 : vector<1x1x8x8xf32> to vector<8x8xf32>
    %65 = vector.shape_cast %60 : vector<8x8xf32> to vector<1x1x8x8xf32>
    tpu.vector_store %arg5[%c0_28, %c2, %c0_29, %c0_30], %65 {strides = array<i32>} : memref<1x4x8x8xf32, #tpu.memory_space<vmem>>, vector<1x1x8x8xf32>,
    %66 = vector.extract_strided_slice %6 {offsets = [0, 24], sizes = [8, 8], strides = [1, 1]} : vector<8x32xf32> to vector<8x8xf32>
    %67 = vector.extract_strided_slice %7 {offsets = [0, 24], sizes = [8, 8], strides = [1, 1]} : vector<8x32xf32> to vector<8x8xf32>
    %68 = vector.extract_strided_slice %8 {offsets = [0, 24], sizes = [8, 8], strides = [1, 1]} : vector<8x32xf32> to vector<8x8xf32>
    %cst_31 = arith.constant dense<0.000000e+00> : vector<8x8xf32>
    %69 = tpu.matmul %66, %67, %cst_31 {dimension_numbers = #tpu.dot_dimension_numbers<[1], [1], [0], [0], [0, 0, 1, 0], [], []>} : vector<8x8xf32>, vector<8x8xf32>, vector<8x8xf32> -> vector<8x8xf32>
    %cst_32 = arith.constant dense<0xFF800000> : vector<8xf32>
    %70 = vector.multi_reduction <maximumf>, %69, %cst_32 [1] : vector<8x8xf32> to vector<8xf32>
    %71 = vector.shape_cast %70 : vector<8xf32> to vector<8x1xf32>
    %72 = vector.broadcast %71 : vector<8x1xf32> to vector<8x8xf32>
    %73 = arith.subf %69, %72 : vector<8x8xf32>
    %74 = math.exp %73 : vector<8x8xf32>
    %cst_33 = arith.constant dense<0.000000e+00> : vector<8xf32>
    %75 = vector.multi_reduction <add>, %74, %cst_33 [1] : vector<8x8xf32> to vector<8xf32>
    %76 = vector.shape_cast %75 : vector<8xf32> to vector<8x1xf32>
    %77 = tpu.reciprocal %76 {approx = true} : vector<8x1xf32> -> vector<8x1xf32>
    %78 = vector.broadcast %77 : vector<8x1xf32> to vector<8x8xf32>
    %79 = arith.mulf %74, %78 : vector<8x8xf32>
    %cst_34 = arith.constant dense<0.000000e+00> : vector<8x8xf32>
    %80 = tpu.matmul %79, %68, %cst_34 {dimension_numbers = #tpu.dot_dimension_numbers<[1], [0], [0], [1], [0, 0, 1, 1], [], []>} : vector<8x8xf32>, vector<8x8xf32>, vector<8x8xf32> -> vector<8x8xf32>
    %c0_35 = arith.constant 0 : index
    %c24 = arith.constant 24 : index
    %81 = vector.load %arg6[%c0_35, %c24] : memref<8x32xf32, #tpu.memory_space<vmem>>, vector<8x8xf32>
    tpu.vector_store %arg6[%c0_35, %c24], %80 {strides = array<i32>} : memref<8x32xf32, #tpu.memory_space<vmem>>, vector<8x8xf32>,
    %c0_36 = arith.constant 0 : index
    %c3 = arith.constant 3 : index
    %c0_37 = arith.constant 0 : index
    %c0_38 = arith.constant 0 : index
    %82 = vector.load %arg5[%c0_36, %c3, %c0_37, %c0_38] : memref<1x4x8x8xf32, #tpu.memory_space<vmem>>, vector<1x1x8x8xf32>
    %83 = vector.shape_cast %82 : vector<1x1x8x8xf32> to vector<8x8xf32>
    %84 = vector.shape_cast %79 : vector<8x8xf32> to vector<1x1x8x8xf32>
    tpu.vector_store %arg5[%c0_36, %c3, %c0_37, %c0_38], %84 {strides = array<i32>} : memref<1x4x8x8xf32, #tpu.memory_space<vmem>>, vector<1x1x8x8xf32>,
    %c0_39 = arith.constant 0 : index
    %c0_40 = arith.constant 0 : index
    %85 = vector.load %arg6[%c0_39, %c0_40] : memref<8x32xf32, #tpu.memory_space<vmem>>, vector<8x32xf32>
    %c0_41 = arith.constant 0 : index
    %c0_42 = arith.constant 0 : index
    %86 = vector.load %arg3[%c0_41, %c0_42] : memref<32x32xf32, #tpu.memory_space<vmem>>, vector<32x32xf32>
    %cst_43 = arith.constant dense<0.000000e+00> : vector<8x32xf32>
    %87 = tpu.matmul %85, %86, %cst_43 {dimension_numbers = #tpu.dot_dimension_numbers<[1], [0], [0], [1], [0, 0, 1, 1], [], []>} : vector<8x32xf32>, vector<32x32xf32>, vector<8x32xf32> -> vector<8x32xf32>
    %c0_44 = arith.constant 0 : index
    %c0_45 = arith.constant 0 : index
    %c0_46 = arith.constant 0 : index
    %88 = vector.load %arg4[%c0_44, %c0_45, %c0_46] : memref<1x8x32xf32, #tpu.memory_space<vmem>>, vector<1x8x32xf32>
    %89 = vector.shape_cast %88 : vector<1x8x32xf32> to vector<8x32xf32>
    %90 = vector.shape_cast %87 : vector<8x32xf32> to vector<1x8x32xf32>
    tpu.vector_store %arg4[%c0_44, %c0_45, %c0_46], %90 {strides = array<i32>} : memref<1x8x32xf32, #tpu.memory_space<vmem>>, vector<1x8x32xf32>,
    return
  }
  func.func @transform_0(%arg0: i32) -> (i32, i32, i32) {
    %c0_i32 = arith.constant 0 : i32
    %c0_i32_0 = arith.constant 0 : i32
    %c0_i32_1 = arith.constant 0 : i32
    return %arg0, %c0_i32, %c0_i32_0 : i32, i32, i32
  }
  func.func @transform_1(%arg0: i32) -> (i32, i32) {
    %c0_i32 = arith.constant 0 : i32
    %c0_i32_0 = arith.constant 0 : i32
    %c0_i32_1 = arith.constant 0 : i32
    return %c0_i32, %c0_i32_0 : i32, i32
  }
  func.func @transform_2(%arg0: i32) -> (i32, i32) {
    %c0_i32 = arith.constant 0 : i32
    %c0_i32_0 = arith.constant 0 : i32
    %c0_i32_1 = arith.constant 0 : i32
    return %c0_i32, %c0_i32_0 : i32, i32
  }
  func.func @transform_3(%arg0: i32) -> (i32, i32, i32) {
    %c0_i32 = arith.constant 0 : i32
    %c0_i32_0 = arith.constant 0 : i32
    %c0_i32_1 = arith.constant 0 : i32
    return %arg0, %c0_i32, %c0_i32_0 : i32, i32, i32
  }
  func.func @transform_4(%arg0: i32) -> (i32, i32, i32, i32) {
    %c0_i32 = arith.constant 0 : i32
    %c0_i32_0 = arith.constant 0 : i32
    %c0_i32_1 = arith.constant 0 : i32
    %c0_i32_2 = arith.constant 0 : i32
    return %arg0, %c0_i32, %c0_i32_0, %c0_i32_1 : i32, i32, i32, i32
  }
}

</mosaic_0001>

<llo_original>
// kernel: tpu_custom_call.1
$region0: #{tpu_custom_call.1}
  #allocation0 [shape = 'u32[]', space=smem, size = 0x4, offset = 0x4, fixed_abs, tag = 'smem constant byte address 0x4 - core index']
  #allocation1 [shape = 'u32[144,128]{1,0:T(1,128)}', space=vmem, size = 0x12000, scoped, tag = 'internal scratch']
  #allocation2 [shape = 'f32[8,32]{1,0:T(8,128)}', space=vmem, size = 0x1000, scoped, tag = 'scratch operand']
  %s0 = inlined_call_operand.hbm [shape: f32[2,8,32], index: 0, kind: input, shape index: {}]
  %s1 = inlined_call_operand.hbm [shape: f32[32,96], index: 1, kind: input, shape index: {}]
  %s2 = inlined_call_operand.hbm [shape: f32[32,32], index: 2, kind: input, shape index: {}]
  %s3 = inlined_call_operand.hbm [shape: f32[2,8,32], index: 3, kind: output, shape index: {0}]
  %s4 = inlined_call_operand.hbm [shape: f32[2,4,8,8], index: 4, kind: output, shape index: {1}]
  %5 = xla_tuple %s3, %s4
  %s6 = sld [smem:[#allocation0]]
  $region65: #{tpu_custom_call.1} parent=0
    _
  %s8 = ssub.s32 1, %s6
  %s9 = scalar_select 0, %s8, %s6
  $region1: #{tpu_custom_call.1} parent=0
    #allocation3 [shape = 'u8[8192]{0}', space=vmem, size = 0x2000, scoped, tag = 'input window, operand 0']
    #allocation4 [shape = 's32[2]{0}', space=sflag, size = 0x8, scoped, tag = 'scoped memory for tpu_custom_call.1']
    #allocation5 [shape = 's32[2]{0}', space=sflag, size = 0x8, scoped, tag = 'scoped memory for tpu_custom_call.1']
    #allocation6 [shape = 'u8[16384]{0}', space=vmem, size = 0x4000, scoped, tag = 'input window, operand 1, single buffered']
    #allocation7 [shape = 's32[1]{0}', space=sflag, size = 0x4, scoped, tag = 'scoped memory for tpu_custom_call.1']
    #allocation8 [shape = 'u8[16384]{0}', space=vmem, size = 0x4000, scoped, tag = 'input window, operand 2, single buffered']
    #allocation9 [shape = 'u8[8192]{0}', space=vmem, size = 0x2000, scoped, tag = 'output window, operand 0']
    #allocation10 [shape = 'u8[32768]{0}', space=vmem, size = 0x8000, scoped, tag = 'output window, operand 1']
    #allocation11 [shape = 's32[2]{0}', space=sflag, size = 0x8, scoped, tag = 'scoped memory for tpu_custom_call.1']
    %10 = vsyncpa [#allocation4], 0
    %s11 = scalar_lea.sflag [#allocation4], 1
    %12 = vsyncpa %s11, 0
    %13 = vsyncpa [#allocation7], 0
    %14 = vsyncpa [#allocation5], 0
    %s15 = scalar_lea.sflag [#allocation5], 1
    %16 = vsyncpa %s15, 0
    %17 = vsyncpa [#allocation11], 0
    %s18 = scalar_lea.sflag [#allocation11], 1
    %19 = vsyncpa %s18, 0
    loop: start=0, step=1, limit=4
    $region2: #{tpu_custom_call.1} parent=1 // loop_pre_header
      _
    $region3: #{tpu_custom_call.1} parent=1 // loop_header
      %s21 = sphi 0, %s25
      %p22 = scmp.ge.s32.totalorder %s21, 4
      %s31 = sphi 0, %s33
      %s34 = sphi 0, %s31
      %s35 = sphi 0, %s34
      %s51 = sphi 0, %s35
      %s55 = sphi 0, %s55
      %s57 = sphi 0, %s55
      %s58 = sphi 0, %s57
      %s72 = sphi 0, %s58
      %s76 = sphi 0, %s76
      %s78 = sphi 0, %s76
      %s79 = sphi 0, %s78
      %s93 = sphi 0, %s79
      %s99 = sphi 0, %s101
      %s102 = sphi 0, %s99
      %s103 = sphi 0, %s102
      %s119 = sphi 0, %s103
      %s125 = sphi 0, %s127
      %s128 = sphi 0, %s125
      %s129 = sphi 0, %s128
      %s145 = sphi 0, %s129
    $region4: #{tpu_custom_call.1} parent=1 // loop_header_branch
      %24 = sbr.rel (%p22) target = $region8
    $region5: #{tpu_custom_call.1} parent=1 // loop_body
      %s26 = ssub.s32 %s21, 1
      %s27 = ssub.s32 %s21, 2
      %s28 = sadd.s32 %s21, 1
      %s29 = ssub.s32 %s21, %s28
      %p30 = scmp.eq.s32.totalorder %s29, 0
      %s32 = sadd.s32 %s31, 1
      %s33 = scalar_select %p30, %s31, %s32
      %p36 = pneg %p30
      %p37 = scmp.eq.s32.totalorder %s21, 1
      %p38 = por %p36, %p37
      %p39 = scmp.ne.s32.totalorder %s31, %s34
      %p40 = scmp.eq.s32.totalorder %s21, 0
      %p41 = por %p39, %p40
      %p42 = scmp.ne.s32.totalorder %s31, %s34
      %p43 = scmp.eq.s32.totalorder %s26, 1
      %p44 = por %p42, %p43
      %p45 = scmp.ne.s32.totalorder %s34, %s35
      %p46 = scmp.eq.s32.totalorder %s26, 0
      %p47 = por %p45, %p46
      %p48 = scmp.ne.s32.totalorder %s34, %s35
      %p49 = scmp.eq.s32.totalorder %s27, 1
      %p50 = por %p48, %p49
      %p52 = scmp.ne.s32.totalorder %s35, %s51
      %p53 = scmp.eq.s32.totalorder %s27, 0
      %p54 = por %p52, %p53
      %s56 = sadd.s32 %s55, 1
      %p59 = scmp.eq.s32.totalorder %s21, 1
      %p60 = scmp.ne.s32.totalorder %s55, %s57
      %p61 = scmp.eq.s32.totalorder %s21, 0
      %p62 = por %p60, %p61
      %p63 = scmp.ne.s32.totalorder %s55, %s57
      %p64 = scmp.eq.s32.totalorder %s26, 1
      %p65 = por %p63, %p64
      %p66 = scmp.ne.s32.totalorder %s57, %s58
      %p67 = scmp.eq.s32.totalorder %s26, 0
      %p68 = por %p66, %p67
      %p69 = scmp.ne.s32.totalorder %s57, %s58
      %p70 = scmp.eq.s32.totalorder %s27, 1
      %p71 = por %p69, %p70
      %p73 = scmp.ne.s32.totalorder %s58, %s72
      %p74 = scmp.eq.s32.totalorder %s27, 0
      %p75 = por %p73, %p74
      %s77 = sadd.s32 %s76, 1
      %p80 = scmp.eq.s32.totalorder %s21, 1
      %p81 = scmp.ne.s32.totalorder %s76, %s78
      %p82 = scmp.eq.s32.totalorder %s21, 0
      %p83 = por %p81, %p82
      %p84 = scmp.ne.s32.totalorder %s76, %s78
      %p85 = scmp.eq.s32.totalorder %s26, 1
      %p86 = por %p84, %p85
      %p87 = scmp.ne.s32.totalorder %s78, %s79
      %p88 = scmp.eq.s32.totalorder %s26, 0
      %p89 = por %p87, %p88
      %p90 = scmp.ne.s32.totalorder %s78, %s79
      %p91 = scmp.eq.s32.totalorder %s27, 1
      %p92 = por %p90, %p91
      %p94 = scmp.ne.s32.totalorder %s79, %s93
      %p95 = scmp.eq.s32.totalorder %s27, 0
      %p96 = por %p94, %p95
      %s97 = ssub.s32 %s21, %s28
      %p98 = scmp.eq.s32.totalorder %s97, 0
      %s100 = sadd.s32 %s99, 1
      %s101 = scalar_select %p98, %s99, %s100
      %p104 = pneg %p98
      %p105 = scmp.eq.s32.totalorder %s21, 1
      %p106 = por %p104, %p105
      %p107 = scmp.ne.s32.totalorder %s99, %s102
      %p108 = scmp.eq.s32.totalorder %s21, 0
      %p109 = por %p107, %p108
      %p110 = scmp.ne.s32.totalorder %s99, %s102
      %p111 = scmp.eq.s32.totalorder %s26, 1
      %p112 = por %p110, %p111
      %p113 = scmp.ne.s32.totalorder %s102, %s103
      %p114 = scmp.eq.s32.totalorder %s26, 0
      %p115 = por %p113, %p114
      %p116 = scmp.ne.s32.totalorder %s102, %s103
      %p117 = scmp.eq.s32.totalorder %s27, 1
      %p118 = por %p116, %p117
      %p120 = scmp.ne.s32.totalorder %s103, %s119
      %p121 = scmp.eq.s32.totalorder %s27, 0
      %p122 = por %p120, %p121
      %s123 = ssub.s32 %s21, %s28
      %p124 = scmp.eq.s32.totalorder %s123, 0
      %s126 = sadd.s32 %s125, 1
      %s127 = scalar_select %p124, %s125, %s126
      %p130 = pneg %p124
      %p131 = scmp.eq.s32.totalorder %s21, 1
      %p132 = por %p130, %p131
      %p133 = scmp.ne.s32.totalorder %s125, %s128
      %p134 = scmp.eq.s32.totalorder %s21, 0
      %p135 = por %p133, %p134
      %p136 = scmp.ne.s32.totalorder %s125, %s128
      %p137 = scmp.eq.s32.totalorder %s26, 1
      %p138 = por %p136, %p137
      %p139 = scmp.ne.s32.totalorder %s128, %s129
      %p140 = scmp.eq.s32.totalorder %s26, 0
      %p141 = por %p139, %p140
      %p142 = scmp.ne.s32.totalorder %s128, %s129
      %p143 = scmp.eq.s32.totalorder %s27, 1
      %p144 = por %p142, %p143
      %p146 = scmp.ne.s32.totalorder %s129, %s145
      %p147 = scmp.eq.s32.totalorder %s27, 0
      %p148 = por %p146, %p147
      %p149 = scmp.le.s32.totalorder 1, %s21
      %p150 = scmp.lt.s32.totalorder %s21, 3
      %p151 = pnand %p149, %p150
      %p152 = pneg %p151
      // Predicated region
      $region9: #{tpu_custom_call.1} parent=5 // pred_check
        _
      $region10: #{tpu_custom_call.1} parent=5 // pred_check_branch
        %154 = sbr.rel (%p151) target = $region12
      $region11: #{tpu_custom_call.1} parent=5 // pred_region
        %s155 = ssub.s32 %s21, 1
        // Predicated region
        $region13: #{tpu_custom_call.1} parent=11 // pred_check
          %p156 = pneg %p68
        $region14: #{tpu_custom_call.1} parent=11 // pred_check_branch
          %158 = sbr.rel (%p156) target = $region16
        $region15: #{tpu_custom_call.1} parent=11 // pred_region
          %s160 = ssub.s32 512, 512
          %161 = vsyncadd [#allocation7], %s160
          %s162 = sshll.u32 [#allocation6], 4
          %s163 = int_to_ptr.vmem [resolvable:$true] %s162
          %168 = dma.hbm_to_vmem [thread:$0]  %s1, 512, %s163, [#allocation7], 128, 128, 8
        $region16: #{tpu_custom_call.1} parent=11 // pred_fallthru
          _
        // Predicated region
        $region17: #{tpu_custom_call.1} parent=11 // pred_check
          %p169 = pneg %p89
        $region18: #{tpu_custom_call.1} parent=11 // pred_check_branch
          %171 = sbr.rel (%p169) target = $region20
        $region19: #{tpu_custom_call.1} parent=11 // pred_region
          %s173 = ssub.s32 512, 512
          %174 = vsyncadd [#allocation7], %s173
          %s175 = sshll.u32 [#allocation8], 4
          %s176 = int_to_ptr.vmem [resolvable:$true] %s175
          %181 = dma.hbm_to_vmem [thread:$0]  %s2, 512, %s176, [#allocation7], 128, 128, 8
        $region20: #{tpu_custom_call.1} parent=11 // pred_fallthru
          _
      $region12: #{tpu_custom_call.1} parent=5 // pred_fallthru
        _
      %p182 = scmp.lt.s32.totalorder %s21, 2
      // Predicated region
      $region21: #{tpu_custom_call.1} parent=5 // pred_check
        %p183 = pneg %p182
      $region22: #{tpu_custom_call.1} parent=5 // pred_check_branch
        %185 = sbr.rel (%p183) target = $region24
      $region23: #{tpu_custom_call.1} parent=5 // pred_region
        // Predicated region
        $region25: #{tpu_custom_call.1} parent=23 // pred_check
          %p186 = pneg %p41
        $region26: #{tpu_custom_call.1} parent=23 // pred_check_branch
          %188 = sbr.rel (%p186) target = $region28
        $region27: #{tpu_custom_call.1} parent=23 // pred_region
          %s189 = sand.u32 %s31, 1
          %s190 = scalar_lea.sflag [#allocation4], %s189
          %s191 = sand.u32 %s31, 1
          %s192 = smul.addr %s191, 8
          %s193 = scalar_lea.vmem [#allocation3], %s192
          %s195 = ssub.s32 128, 128
          %196 = vsyncadd %s190, %s195
          %s197 = smul.addr %s21, 128
          %s198 = scalar_lea.hbm %s0, %s197
          %s200 = sshll.u32 %s193, 4
          %s201 = int_to_ptr.vmem [resolvable:$true] %s200
          %203 = dma.hbm_to_vmem [thread:$0]  %s198, 128, %s201, %s190
        $region28: #{tpu_custom_call.1} parent=23 // pred_fallthru
          _
      $region24: #{tpu_custom_call.1} parent=5 // pred_fallthru
        _
      %p204 = scmp.le.s32.totalorder 1, %s21
      %p205 = scmp.lt.s32.totalorder %s21, 3
      %p206 = pnand %p204, %p205
      %p207 = pneg %p206
      // Predicated region
      $region29: #{tpu_custom_call.1} parent=5 // pred_check
        _
      $region30: #{tpu_custom_call.1} parent=5 // pred_check_branch
        %209 = sbr.rel (%p206) target = $region32
      $region31: #{tpu_custom_call.1} parent=5 // pred_region
        %s210 = ssub.s32 %s21, 1
        %s211 = sand.u32 %s34, 1
        %s212 = scalar_lea.sflag [#allocation4], %s211
        %s213 = sand.u32 %s34, 1
        %s214 = smul.addr %s213, 8
        %s215 = scalar_lea.vmem [#allocation3], %s214
        // Predicated region
        $region33: #{tpu_custom_call.1} parent=31 // pred_check
          %p216 = pneg %p47
        $region34: #{tpu_custom_call.1} parent=31 // pred_check_branch
          %218 = sbr.rel (%p216) target = $region36
        $region35: #{tpu_custom_call.1} parent=31 // pred_region
          %219 = dma.done %s212, 128
        $region36: #{tpu_custom_call.1} parent=31 // pred_fallthru
          _
        // Predicated region
        $region37: #{tpu_custom_call.1} parent=31 // pred_check
          %p220 = pneg %p68
        $region38: #{tpu_custom_call.1} parent=31 // pred_check_branch
          %222 = sbr.rel (%p220) target = $region40
        $region39: #{tpu_custom_call.1} parent=31 // pred_region
          %223 = dma.done [#allocation7], 512
        $region40: #{tpu_custom_call.1} parent=31 // pred_fallthru
          _
        // Predicated region
        $region41: #{tpu_custom_call.1} parent=31 // pred_check
          %p224 = pneg %p89
        $region42: #{tpu_custom_call.1} parent=31 // pred_check_branch
          %226 = sbr.rel (%p224) target = $region44
        $region43: #{tpu_custom_call.1} parent=31 // pred_region
          %227 = dma.done [#allocation7], 512
        $region44: #{tpu_custom_call.1} parent=31 // pred_fallthru
          _
        %s228 = sand.u32 %s34, 1
        %s229 = scalar_lea.sflag [#allocation4], %s228
        %s230 = sand.u32 %s34, 1
        %s231 = smul.addr %s230, 8
        %s232 = scalar_lea.vmem [#allocation3], %s231
        %p233 = pneg %p47
        %p234 = pneg %p44
        %p235 = pneg %p68
        %p236 = pneg %p65
        %p237 = pneg %p89
        %p238 = pneg %p86
        %p239 = pneg %p115
        %p240 = pneg %p112
        %s241 = sand.u32 %s102, 1
        %s242 = scalar_lea.sflag [#allocation5], %s241
        %s243 = sand.u32 %s102, 1
        %s244 = smul.addr %s243, 8
        %s245 = scalar_lea.vmem [#allocation9], %s244
        %p246 = pneg %p141
        %p247 = pneg %p138
        %s248 = sand.u32 %s128, 1
        %s249 = scalar_lea.sflag [#allocation11], %s248
        %s250 = sand.u32 %s128, 1
        %s251 = smul.addr %s250, 32
        %s252 = scalar_lea.vmem [#allocation10], %s251
        %v253 = vld [vmem:[%s215] sm:$0xff]
        %v254 = vld [vmem:[#allocation6] sm:$0xff]
        %v255 = vld [vmem:[#allocation6 + $0x8] sm:$0xff]
        %v256 = vld [vmem:[#allocation6 + $0x10] sm:$0xff]
        %v257 = vld [vmem:[#allocation6 + $0x18] sm:$0xff]
        %vm258 = vcmask 261120
        %v260 = vsel %vm258, %v253, 0
        %262 = vmatprep.subr.mxu0 0.0
        %263 = vmatpush1.msra.mxu0 %v254
        %264 = vmatprep.subr.mxu0 0.0
        %265 = vmatpush1.msra.mxu0 %v255
        %266 = vmatprep.subr.mxu0 0.0
        %267 = vmatpush1.msra.mxu0 %v256
        %268 = vmatprep.subr.mxu0 0.0
        %269 = vmatpush1.msra.mxu0 %v257
        %270 = vmatprep.subr.mxu0 0.0
        %271 = vmatpush1.msra.mxu0 0.0
        %272 = vmatprep.subr.mxu0 0.0
        %273 = vmatpush1.msra.mxu0 0.0
        %274 = vmatprep.subr.mxu0 0.0
        %275 = vmatpush1.msra.mxu0 0.0
        %276 = vmatprep.subr.mxu0 0.0
        %277 = vmatpush1.msra.mxu0 0.0
        %278 = vmatprep.subr.mxu0 0.0
        %279 = vmatpush1.msra.mxu0 0.0
        %280 = vmatprep.subr.mxu0 0.0
        %281 = vmatpush1.msra.mxu0 0.0
        %282 = vmatprep.subr.mxu0 0.0
        %283 = vmatpush1.msra.mxu0 0.0
        %284 = vmatprep.subr.mxu0 0.0
        %285 = vmatpush1.msra.mxu0 0.0
        %286 = vmatprep.subr.mxu0 0.0
        %287 = vmatpush1.msra.mxu0 0.0
        %288 = vmatprep.subr.mxu0 0.0
        %289 = vmatpush1.msra.mxu0 0.0
        %290 = vmatprep.subr.mxu0 0.0
        %291 = vmatpush1.msra.mxu0 0.0
        %292 = vmatprep.subr.mxu0 0.0
        %293 = vmatpush1.msra.mxu0 0.0
        %294 = vmatprep.subr.mxu0 0.0
        %295 = vmatpush1.msra.mxu0 0.0
        %296 = vmatprep.subr.mxu0 0.0
        %297 = vmatpush1.msra.mxu0 0.0
        %298 = vmatprep.subr.mxu0 0.0
        %299 = vmatpush1.msra.mxu0 0.0
        %300 = vmatprep.subr.mxu0 0.0
        %301 = vmatpush1.msra.mxu0 0.0
        %302 = vmatprep.subr.mxu0 0.0
        %303 = vmatpush1.msra.mxu0 0.0
        %304 = vmatprep.subr.mxu0 0.0
        %305 = vmatpush1.msra.mxu0 0.0
        %306 = vmatprep.subr.mxu0 0.0
        %307 = vmatpush1.msra.mxu0 0.0
        %308 = vmatprep.subr.mxu0 0.0
        %309 = vmatpush1.msra.mxu0 0.0
        %310 = vmatprep.subr.mxu0 0.0
        %311 = vmatpush1.msra.mxu0 0.0
        %312 = vmatprep.subr.mxu0 0.0
        %313 = vmatpush1.msra.mxu0 0.0
        %314 = vmatprep.subr.mxu0 0.0
        %315 = vmatpush1.msra.mxu0 0.0
        %316 = vmatprep.subr.mxu0 0.0
        %317 = vmatpush1.msra.mxu0 0.0
        %318 = vmatprep.subr.mxu0 0.0
        %319 = vmatpush1.msra.mxu0 0.0
        %320 = vmatprep.subr.mxu0 0.0
        %321 = vmatpush1.msra.mxu0 0.0
        %322 = vmatprep.subr.mxu0 0.0
        %323 = vmatpush1.msra.mxu0 0.0
        %324 = vmatprep.subr.mxu0 0.0
        %325 = vmatpush1.msra.mxu0 0.0
        %326 = vmatprep.mubr.f32.mxu0 0.0
        %327 = vmatmul.mubr.f32.gmra.mrb[0].mxu0 %v260
        %v328 = vpop.f32.mrb[0].mxu0
        %v329 = vadd.f32 0.0, %v328
        %v330 = vpop.f32.mrb[0].mxu0
        %331 = vdwg.mxu0
        %v332 = vmul.f32 %v329, 0.35355338
        %334 = vrot.lane.b32.xlu0 %v329, 96
        %v335 = vpop.permute.xlu0 %334
        %vm336 = vcmask 64512
        %v338 = vsel %vm336, %v332, 0
        %v340 = vsel %vm336, %v335, 0
        %342 = vmatprep.subr.mxu0 0.0
        %343 = vmatpush1.xpose.msra.mxu0 %v340
        %344 = vmatprep.subr.mxu0 0.0
        %345 = vmatpush1.xpose.msra.mxu0 0.0
        %346 = vmatprep.subr.mxu0 0.0
        %347 = vmatpush1.xpose.msra.mxu0 0.0
        %348 = vmatprep.subr.mxu0 0.0
        %349 = vmatpush1.xpose.msra.mxu0 0.0
        %350 = vmatprep.subr.mxu0 0.0
        %351 = vmatpush1.xpose.msra.mxu0 0.0
        %352 = vmatprep.subr.mxu0 0.0
        %353 = vmatpush1.xpose.msra.mxu0 0.0
        %354 = vmatprep.subr.mxu0 0.0
        %355 = vmatpush1.xpose.msra.mxu0 0.0
        %356 = vmatprep.subr.mxu0 0.0
        %357 = vmatpush1.xpose.msra.mxu0 0.0
        %358 = vmatprep.subr.mxu0 0.0
        %359 = vmatpush1.xpose.msra.mxu0 0.0
        %360 = vmatprep.subr.mxu0 0.0
        %361 = vmatpush1.xpose.msra.mxu0 0.0
        %362 = vmatprep.subr.mxu0 0.0
        %363 = vmatpush1.xpose.msra.mxu0 0.0
        %364 = vmatprep.subr.mxu0 0.0
        %365 = vmatpush1.xpose.msra.mxu0 0.0
        %366 = vmatprep.subr.mxu0 0.0
        %367 = vmatpush1.xpose.msra.mxu0 0.0
        %368 = vmatprep.subr.mxu0 0.0
        %369 = vmatpush1.xpose.msra.mxu0 0.0
        %370 = vmatprep.subr.mxu0 0.0
        %371 = vmatpush1.xpose.msra.mxu0 0.0
        %372 = vmatprep.subr.mxu0 0.0
        %373 = vmatpush1.xpose.msra.mxu0 0.0
        %374 = vmatprep.subr.mxu0 0.0
        %375 = vmatpush1.xpose.msra.mxu0 0.0
        %376 = vmatprep.subr.mxu0 0.0
        %377 = vmatpush1.xpose.msra.mxu0 0.0
        %378 = vmatprep.subr.mxu0 0.0
        %379 = vmatpush1.xpose.msra.mxu0 0.0
        %380 = vmatprep.subr.mxu0 0.0
        %381 = vmatpush1.xpose.msra.mxu0 0.0
        %382 = vmatprep.subr.mxu0 0.0
        %383 = vmatpush1.xpose.msra.mxu0 0.0
        %384 = vmatprep.subr.mxu0 0.0
        %385 = vmatpush1.xpose.msra.mxu0 0.0
        %386 = vmatprep.subr.mxu0 0.0
        %387 = vmatpush1.xpose.msra.mxu0 0.0
        %388 = vmatprep.subr.mxu0 0.0
        %389 = vmatpush1.xpose.msra.mxu0 0.0
        %390 = vmatprep.subr.mxu0 0.0
        %391 = vmatpush1.xpose.msra.mxu0 0.0
        %392 = vmatprep.subr.mxu0 0.0
        %393 = vmatpush1.xpose.msra.mxu0 0.0
        %394 = vmatprep.subr.mxu0 0.0
        %395 = vmatpush1.xpose.msra.mxu0 0.0
        %396 = vmatprep.subr.mxu0 0.0
        %397 = vmatpush1.xpose.msra.mxu0 0.0
        %398 = vmatprep.subr.mxu0 0.0
        %399 = vmatpush1.xpose.msra.mxu0 0.0
        %400 = vmatprep.subr.mxu0 0.0
        %401 = vmatpush1.xpose.msra.mxu0 0.0
        %402 = vmatprep.subr.mxu0 0.0
        %403 = vmatpush1.xpose.msra.mxu0 0.0
        %404 = vmatprep.subr.mxu0 0.0
        %405 = vmatpush1.xpose.msra.mxu0 0.0
        %406 = vmatprep.mubr.f32.mxu0 0.0
        %407 = vmatmul.mubr.f32.gmra.mrb[0].mxu0 %v338
        %v408 = vpop.f32.mrb[0].mxu0
        %v409 = vadd.f32 0.0, %v408
        %v410 = vpop.f32.mrb[0].mxu0
        %411 = vdwg.mxu0
        %v412 = vsel %vm336, %v409, -inf
        %413 = vmax.xlane.f32.xlu0 %v412
        %v414 = vpop.xlane.xlu0 %413
        %v415 = vsub.f32 %v409, %v414
        %v416 = vmul.f32 %v415, 1.442695
        %v417 = vpow.pop %v416
        %v418 = vsel %vm336, %v417, 0.0
        %419 = vadd.xlane.f32.xlu0 %v418
        %v420 = vpop.xlane.xlu0 %419
        %v421 = vrcp.pop %v420
        %v422 = vmul.f32 %v417, %v421
        %423 = vrot.lane.b32.xlu0 %v329, 64
        %v424 = vpop.permute.xlu0 %423
        %v427 = vsel %vm336, %v422, 0
        %429 = vmatprep.subr.mxu0 0.0
        %430 = vmatpush1.msra.mxu0 %v424
        %431 = vmatprep.subr.mxu0 0.0
        %432 = vmatpush1.msra.mxu0 0.0
        %433 = vmatprep.subr.mxu0 0.0
        %434 = vmatpush1.msra.mxu0 0.0
        %435 = vmatprep.subr.mxu0 0.0
        %436 = vmatpush1.msra.mxu0 0.0
        %437 = vmatprep.subr.mxu0 0.0
        %438 = vmatpush1.msra.mxu0 0.0
        %439 = vmatprep.subr.mxu0 0.0
        %440 = vmatpush1.msra.mxu0 0.0
        %441 = vmatprep.subr.mxu0 0.0
        %442 = vmatpush1.msra.mxu0 0.0
        %443 = vmatprep.subr.mxu0 0.0
        %444 = vmatpush1.msra.mxu0 0.0
        %445 = vmatprep.subr.mxu0 0.0
        %446 = vmatpush1.msra.mxu0 0.0
        %447 = vmatprep.subr.mxu0 0.0
        %448 = vmatpush1.msra.mxu0 0.0
        %449 = vmatprep.subr.mxu0 0.0
        %450 = vmatpush1.msra.mxu0 0.0
        %451 = vmatprep.subr.mxu0 0.0
        %452 = vmatpush1.msra.mxu0 0.0
        %453 = vmatprep.subr.mxu0 0.0
        %454 = vmatpush1.msra.mxu0 0.0
        %455 = vmatprep.subr.mxu0 0.0
        %456 = vmatpush1.msra.mxu0 0.0
        %457 = vmatprep.subr.mxu0 0.0
        %458 = vmatpush1.msra.mxu0 0.0
        %459 = vmatprep.subr.mxu0 0.0
        %460 = vmatpush1.msra.mxu0 0.0
        %461 = vmatprep.subr.mxu0 0.0
        %462 = vmatpush1.msra.mxu0 0.0
        %463 = vmatprep.subr.mxu0 0.0
        %464 = vmatpush1.msra.mxu0 0.0
        %465 = vmatprep.subr.mxu0 0.0
        %466 = vmatpush1.msra.mxu0 0.0
        %467 = vmatprep.subr.mxu0 0.0
        %468 = vmatpush1.msra.mxu0 0.0
        %469 = vmatprep.subr.mxu0 0.0
        %470 = vmatpush1.msra.mxu0 0.0
        %471 = vmatprep.subr.mxu0 0.0
        %472 = vmatpush1.msra.mxu0 0.0
        %473 = vmatprep.subr.mxu0 0.0
        %474 = vmatpush1.msra.mxu0 0.0
        %475 = vmatprep.subr.mxu0 0.0
        %476 = vmatpush1.msra.mxu0 0.0
        %477 = vmatprep.subr.mxu0 0.0
        %478 = vmatpush1.msra.mxu0 0.0
        %479 = vmatprep.subr.mxu0 0.0
        %480 = vmatpush1.msra.mxu0 0.0
        %481 = vmatprep.subr.mxu0 0.0
        %482 = vmatpush1.msra.mxu0 0.0
        %483 = vmatprep.subr.mxu0 0.0
        %484 = vmatpush1.msra.mxu0 0.0
        %485 = vmatprep.subr.mxu0 0.0
        %486 = vmatpush1.msra.mxu0 0.0
        %487 = vmatprep.subr.mxu0 0.0
        %488 = vmatpush1.msra.mxu0 0.0
        %489 = vmatprep.subr.mxu0 0.0
        %490 = vmatpush1.msra.mxu0 0.0
        %491 = vmatprep.subr.mxu0 0.0
        %492 = vmatpush1.msra.mxu0 0.0
        %493 = vmatprep.mubr.f32.mxu0 0.0
        %494 = vmatmul.mubr.f32.gmra.mrb[0].mxu0 %v427
        %v495 = vpop.f32.mrb[0].mxu0
        %v496 = vadd.f32 0.0, %v495
        %v497 = vpop.f32.mrb[0].mxu0
        %498 = vdwg.mxu0
        %499 = vst.msk [vmem:[#allocation2] sm:$0xff] %vm336, %v496
        %500 = vst.msk [vmem:[%s252] sm:$0xff] %vm336, %v422
        %501 = vrot.lane.b32.xlu0 %v332, 120
        %v502 = vpop.permute.xlu0 %501
        %503 = vrot.lane.b32.xlu0 %v329, 88
        %v504 = vpop.permute.xlu0 %503
        %v505 = vsel %vm336, %v502, 0
        %v507 = vsel %vm336, %v504, 0
        %509 = vmatprep.subr.mxu0 0.0
        %510 = vmatpush1.xpose.msra.mxu0 %v507
        %511 = vmatprep.subr.mxu0 0.0
        %512 = vmatpush1.xpose.msra.mxu0 0.0
        %513 = vmatprep.subr.mxu0 0.0
        %514 = vmatpush1.xpose.msra.mxu0 0.0
        %515 = vmatprep.subr.mxu0 0.0
        %516 = vmatpush1.xpose.msra.mxu0 0.0
        %517 = vmatprep.subr.mxu0 0.0
        %518 = vmatpush1.xpose.msra.mxu0 0.0
        %519 = vmatprep.subr.mxu0 0.0
        %520 = vmatpush1.xpose.msra.mxu0 0.0
        %521 = vmatprep.subr.mxu0 0.0
        %522 = vmatpush1.xpose.msra.mxu0 0.0
        %523 = vmatprep.subr.mxu0 0.0
        %524 = vmatpush1.xpose.msra.mxu0 0.0
        %525 = vmatprep.subr.mxu0 0.0
        %526 = vmatpush1.xpose.msra.mxu0 0.0
        %527 = vmatprep.subr.mxu0 0.0
        %528 = vmatpush1.xpose.msra.mxu0 0.0
        %529 = vmatprep.subr.mxu0 0.0
        %530 = vmatpush1.xpose.msra.mxu0 0.0
        %531 = vmatprep.subr.mxu0 0.0
        %532 = vmatpush1.xpose.msra.mxu0 0.0
        %533 = vmatprep.subr.mxu0 0.0
        %534 = vmatpush1.xpose.msra.mxu0 0.0
        %535 = vmatprep.subr.mxu0 0.0
        %536 = vmatpush1.xpose.msra.mxu0 0.0
        %537 = vmatprep.subr.mxu0 0.0
        %538 = vmatpush1.xpose.msra.mxu0 0.0
        %539 = vmatprep.subr.mxu0 0.0
        %540 = vmatpush1.xpose.msra.mxu0 0.0
        %541 = vmatprep.subr.mxu0 0.0
        %542 = vmatpush1.xpose.msra.mxu0 0.0
        %543 = vmatprep.subr.mxu0 0.0
        %544 = vmatpush1.xpose.msra.mxu0 0.0
        %545 = vmatprep.subr.mxu0 0.0
        %546 = vmatpush1.xpose.msra.mxu0 0.0
        %547 = vmatprep.subr.mxu0 0.0
        %548 = vmatpush1.xpose.msra.mxu0 0.0
        %549 = vmatprep.subr.mxu0 0.0
        %550 = vmatpush1.xpose.msra.mxu0 0.0
        %551 = vmatprep.subr.mxu0 0.0
        %552 = vmatpush1.xpose.msra.mxu0 0.0
        %553 = vmatprep.subr.mxu0 0.0
        %554 = vmatpush1.xpose.msra.mxu0 0.0
        %555 = vmatprep.subr.mxu0 0.0
        %556 = vmatpush1.xpose.msra.mxu0 0.0
        %557 = vmatprep.subr.mxu0 0.0
        %558 = vmatpush1.xpose.msra.mxu0 0.0
        %559 = vmatprep.subr.mxu0 0.0
        %560 = vmatpush1.xpose.msra.mxu0 0.0
        %561 = vmatprep.subr.mxu0 0.0
        %562 = vmatpush1.xpose.msra.mxu0 0.0
        %563 = vmatprep.subr.mxu0 0.0
        %564 = vmatpush1.xpose.msra.mxu0 0.0
        %565 = vmatprep.subr.mxu0 0.0
        %566 = vmatpush1.xpose.msra.mxu0 0.0
        %567 = vmatprep.subr.mxu0 0.0
        %568 = vmatpush1.xpose.msra.mxu0 0.0
        %569 = vmatprep.subr.mxu0 0.0
        %570 = vmatpush1.xpose.msra.mxu0 0.0
        %571 = vmatprep.subr.mxu0 0.0
        %572 = vmatpush1.xpose.msra.mxu0 0.0
        %573 = vmatprep.mubr.f32.mxu0 0.0
        %574 = vmatmul.mubr.f32.gmra.mrb[0].mxu0 %v505
        %v575 = vpop.f32.mrb[0].mxu0
        %v576 = vadd.f32 0.0, %v575
        %v577 = vpop.f32.mrb[0].mxu0
        %578 = vdwg.mxu0
        %v579 = vsel %vm336, %v576, -inf
        %580 = vmax.xlane.f32.xlu0 %v579
        %v581 = vpop.xlane.xlu0 %580
        %v582 = vsub.f32 %v576, %v581
        %v583 = vmul.f32 %v582, 1.442695
        %v584 = vpow.pop %v583
        %v585 = vsel %vm336, %v584, 0.0
        %586 = vadd.xlane.f32.xlu0 %v585
        %v587 = vpop.xlane.xlu0 %586
        %v588 = vrcp.pop %v587
        %v589 = vmul.f32 %v584, %v588
        %590 = vrot.lane.b32.xlu0 %v329, 56
        %v591 = vpop.permute.xlu0 %590
        %v594 = vsel %vm336, %v589, 0
        %596 = vmatprep.subr.mxu0 0.0
        %597 = vmatpush1.msra.mxu0 %v591
        %598 = vmatprep.subr.mxu0 0.0
        %599 = vmatpush1.msra.mxu0 0.0
        %600 = vmatprep.subr.mxu0 0.0
        %601 = vmatpush1.msra.mxu0 0.0
        %602 = vmatprep.subr.mxu0 0.0
        %603 = vmatpush1.msra.mxu0 0.0
        %604 = vmatprep.subr.mxu0 0.0
        %605 = vmatpush1.msra.mxu0 0.0
        %606 = vmatprep.subr.mxu0 0.0
        %607 = vmatpush1.msra.mxu0 0.0
        %608 = vmatprep.subr.mxu0 0.0
        %609 = vmatpush1.msra.mxu0 0.0
        %610 = vmatprep.subr.mxu0 0.0
        %611 = vmatpush1.msra.mxu0 0.0
        %612 = vmatprep.subr.mxu0 0.0
        %613 = vmatpush1.msra.mxu0 0.0
        %614 = vmatprep.subr.mxu0 0.0
        %615 = vmatpush1.msra.mxu0 0.0
        %616 = vmatprep.subr.mxu0 0.0
        %617 = vmatpush1.msra.mxu0 0.0
        %618 = vmatprep.subr.mxu0 0.0
        %619 = vmatpush1.msra.mxu0 0.0
        %620 = vmatprep.subr.mxu0 0.0
        %621 = vmatpush1.msra.mxu0 0.0
        %622 = vmatprep.subr.mxu0 0.0
        %623 = vmatpush1.msra.mxu0 0.0
        %624 = vmatprep.subr.mxu0 0.0
        %625 = vmatpush1.msra.mxu0 0.0
        %626 = vmatprep.subr.mxu0 0.0
        %627 = vmatpush1.msra.mxu0 0.0
        %628 = vmatprep.subr.mxu0 0.0
        %629 = vmatpush1.msra.mxu0 0.0
        %630 = vmatprep.subr.mxu0 0.0
        %631 = vmatpush1.msra.mxu0 0.0
        %632 = vmatprep.subr.mxu0 0.0
        %633 = vmatpush1.msra.mxu0 0.0
        %634 = vmatprep.subr.mxu0 0.0
        %635 = vmatpush1.msra.mxu0 0.0
        %636 = vmatprep.subr.mxu0 0.0
        %637 = vmatpush1.msra.mxu0 0.0
        %638 = vmatprep.subr.mxu0 0.0
        %639 = vmatpush1.msra.mxu0 0.0
        %640 = vmatprep.subr.mxu0 0.0
        %641 = vmatpush1.msra.mxu0 0.0
        %642 = vmatprep.subr.mxu0 0.0
        %643 = vmatpush1.msra.mxu0 0.0
        %644 = vmatprep.subr.mxu0 0.0
        %645 = vmatpush1.msra.mxu0 0.0
        %646 = vmatprep.subr.mxu0 0.0
        %647 = vmatpush1.msra.mxu0 0.0
        %648 = vmatprep.subr.mxu0 0.0
        %649 = vmatpush1.msra.mxu0 0.0
        %650 = vmatprep.subr.mxu0 0.0
        %651 = vmatpush1.msra.mxu0 0.0
        %652 = vmatprep.subr.mxu0 0.0
        %653 = vmatpush1.msra.mxu0 0.0
        %654 = vmatprep.subr.mxu0 0.0
        %655 = vmatpush1.msra.mxu0 0.0
        %656 = vmatprep.subr.mxu0 0.0
        %657 = vmatpush1.msra.mxu0 0.0
        %658 = vmatprep.subr.mxu0 0.0
        %659 = vmatpush1.msra.mxu0 0.0
        %660 = vmatprep.mubr.f32.mxu0 0.0
        %661 = vmatmul.mubr.f32.gmra.mrb[0].mxu0 %v594
        %v662 = vpop.f32.mrb[0].mxu0
        %v663 = vadd.f32 0.0, %v662
        %v664 = vpop.f32.mrb[0].mxu0
        %665 = vdwg.mxu0
        %667 = vrot.lane.b32.xlu0 %v663, 8
        %v668 = vpop.permute.xlu0 %667
        %vm670 = vcmask 130112
        %671 = vst.msk [vmem:[#allocation2] sm:$0xff] %vm670, %v668
        %s672 = scalar_lea.vmem %s252, 8 [#allocation10]
        %673 = vst.msk [vmem:[%s672] sm:$0xff] %vm336, %v589
        %674 = vrot.lane.b32.xlu0 %v332, 112
        %v675 = vpop.permute.xlu0 %674
        %676 = vrot.lane.b32.xlu0 %v329, 80
        %v677 = vpop.permute.xlu0 %676
        %v678 = vsel %vm336, %v675, 0
        %v680 = vsel %vm336, %v677, 0
        %682 = vmatprep.subr.mxu0 0.0
        %683 = vmatpush1.xpose.msra.mxu0 %v680
        %684 = vmatprep.subr.mxu0 0.0
        %685 = vmatpush1.xpose.msra.mxu0 0.0
        %686 = vmatprep.subr.mxu0 0.0
        %687 = vmatpush1.xpose.msra.mxu0 0.0
        %688 = vmatprep.subr.mxu0 0.0
        %689 = vmatpush1.xpose.msra.mxu0 0.0
        %690 = vmatprep.subr.mxu0 0.0
        %691 = vmatpush1.xpose.msra.mxu0 0.0
        %692 = vmatprep.subr.mxu0 0.0
        %693 = vmatpush1.xpose.msra.mxu0 0.0
        %694 = vmatprep.subr.mxu0 0.0
        %695 = vmatpush1.xpose.msra.mxu0 0.0
        %696 = vmatprep.subr.mxu0 0.0
        %697 = vmatpush1.xpose.msra.mxu0 0.0
        %698 = vmatprep.subr.mxu0 0.0
        %699 = vmatpush1.xpose.msra.mxu0 0.0
        %700 = vmatprep.subr.mxu0 0.0
        %701 = vmatpush1.xpose.msra.mxu0 0.0
        %702 = vmatprep.subr.mxu0 0.0
        %703 = vmatpush1.xpose.msra.mxu0 0.0
        %704 = vmatprep.subr.mxu0 0.0
        %705 = vmatpush1.xpose.msra.mxu0 0.0
        %706 = vmatprep.subr.mxu0 0.0
        %707 = vmatpush1.xpose.msra.mxu0 0.0
        %708 = vmatprep.subr.mxu0 0.0
        %709 = vmatpush1.xpose.msra.mxu0 0.0
        %710 = vmatprep.subr.mxu0 0.0
        %711 = vmatpush1.xpose.msra.mxu0 0.0
        %712 = vmatprep.subr.mxu0 0.0
        %713 = vmatpush1.xpose.msra.mxu0 0.0
        %714 = vmatprep.subr.mxu0 0.0
        %715 = vmatpush1.xpose.msra.mxu0 0.0
        %716 = vmatprep.subr.mxu0 0.0
        %717 = vmatpush1.xpose.msra.mxu0 0.0
        %718 = vmatprep.subr.mxu0 0.0
        %719 = vmatpush1.xpose.msra.mxu0 0.0
        %720 = vmatprep.subr.mxu0 0.0
        %721 = vmatpush1.xpose.msra.mxu0 0.0
        %722 = vmatprep.subr.mxu0 0.0
        %723 = vmatpush1.xpose.msra.mxu0 0.0
        %724 = vmatprep.subr.mxu0 0.0
        %725 = vmatpush1.xpose.msra.mxu0 0.0
        %726 = vmatprep.subr.mxu0 0.0
        %727 = vmatpush1.xpose.msra.mxu0 0.0
        %728 = vmatprep.subr.mxu0 0.0
        %729 = vmatpush1.xpose.msra.mxu0 0.0
        %730 = vmatprep.subr.mxu0 0.0
        %731 = vmatpush1.xpose.msra.mxu0 0.0
        %732 = vmatprep.subr.mxu0 0.0
        %733 = vmatpush1.xpose.msra.mxu0 0.0
        %734 = vmatprep.subr.mxu0 0.0
        %735 = vmatpush1.xpose.msra.mxu0 0.0
        %736 = vmatprep.subr.mxu0 0.0
        %737 = vmatpush1.xpose.msra.mxu0 0.0
        %738 = vmatprep.subr.mxu0 0.0
        %739 = vmatpush1.xpose.msra.mxu0 0.0
        %740 = vmatprep.subr.mxu0 0.0
        %741 = vmatpush1.xpose.msra.mxu0 0.0
        %742 = vmatprep.subr.mxu0 0.0
        %743 = vmatpush1.xpose.msra.mxu0 0.0
        %744 = vmatprep.subr.mxu0 0.0
        %745 = vmatpush1.xpose.msra.mxu0 0.0
        %746 = vmatprep.mubr.f32.mxu0 0.0
        %747 = vmatmul.mubr.f32.gmra.mrb[0].mxu0 %v678
        %v748 = vpop.f32.mrb[0].mxu0
        %v749 = vadd.f32 0.0, %v748
        %v750 = vpop.f32.mrb[0].mxu0
        %751 = vdwg.mxu0
        %v752 = vsel %vm336, %v749, -inf
        %753 = vmax.xlane.f32.xlu0 %v752
        %v754 = vpop.xlane.xlu0 %753
        %v755 = vsub.f32 %v749, %v754
        %v756 = vmul.f32 %v755, 1.442695
        %v757 = vpow.pop %v756
        %v758 = vsel %vm336, %v757, 0.0
        %759 = vadd.xlane.f32.xlu0 %v758
        %v760 = vpop.xlane.xlu0 %759
        %v761 = vrcp.pop %v760
        %v762 = vmul.f32 %v757, %v761
        %763 = vrot.lane.b32.xlu0 %v329, 48
        %v764 = vpop.permute.xlu0 %763
        %v767 = vsel %vm336, %v762, 0
        %769 = vmatprep.subr.mxu0 0.0
        %770 = vmatpush1.msra.mxu0 %v764
        %771 = vmatprep.subr.mxu0 0.0
        %772 = vmatpush1.msra.mxu0 0.0
        %773 = vmatprep.subr.mxu0 0.0
        %774 = vmatpush1.msra.mxu0 0.0
        %775 = vmatprep.subr.mxu0 0.0
        %776 = vmatpush1.msra.mxu0 0.0
        %777 = vmatprep.subr.mxu0 0.0
        %778 = vmatpush1.msra.mxu0 0.0
        %779 = vmatprep.subr.mxu0 0.0
        %780 = vmatpush1.msra.mxu0 0.0
        %781 = vmatprep.subr.mxu0 0.0
        %782 = vmatpush1.msra.mxu0 0.0
        %783 = vmatprep.subr.mxu0 0.0
        %784 = vmatpush1.msra.mxu0 0.0
        %785 = vmatprep.subr.mxu0 0.0
        %786 = vmatpush1.msra.mxu0 0.0
        %787 = vmatprep.subr.mxu0 0.0
        %788 = vmatpush1.msra.mxu0 0.0
        %789 = vmatprep.subr.mxu0 0.0
        %790 = vmatpush1.msra.mxu0 0.0
        %791 = vmatprep.subr.mxu0 0.0
        %792 = vmatpush1.msra.mxu0 0.0
        %793 = vmatprep.subr.mxu0 0.0
        %794 = vmatpush1.msra.mxu0 0.0
        %795 = vmatprep.subr.mxu0 0.0
        %796 = vmatpush1.msra.mxu0 0.0
        %797 = vmatprep.subr.mxu0 0.0
        %798 = vmatpush1.msra.mxu0 0.0
        %799 = vmatprep.subr.mxu0 0.0
        %800 = vmatpush1.msra.mxu0 0.0
        %801 = vmatprep.subr.mxu0 0.0
        %802 = vmatpush1.msra.mxu0 0.0
        %803 = vmatprep.subr.mxu0 0.0
        %804 = vmatpush1.msra.mxu0 0.0
        %805 = vmatprep.subr.mxu0 0.0
        %806 = vmatpush1.msra.mxu0 0.0
        %807 = vmatprep.subr.mxu0 0.0
        %808 = vmatpush1.msra.mxu0 0.0
        %809 = vmatprep.subr.mxu0 0.0
        %810 = vmatpush1.msra.mxu0 0.0
        %811 = vmatprep.subr.mxu0 0.0
        %812 = vmatpush1.msra.mxu0 0.0
        %813 = vmatprep.subr.mxu0 0.0
        %814 = vmatpush1.msra.mxu0 0.0
        %815 = vmatprep.subr.mxu0 0.0
        %816 = vmatpush1.msra.mxu0 0.0
        %817 = vmatprep.subr.mxu0 0.0
        %818 = vmatpush1.msra.mxu0 0.0
        %819 = vmatprep.subr.mxu0 0.0
        %820 = vmatpush1.msra.mxu0 0.0
        %821 = vmatprep.subr.mxu0 0.0
        %822 = vmatpush1.msra.mxu0 0.0
        %823 = vmatprep.subr.mxu0 0.0
        %824 = vmatpush1.msra.mxu0 0.0
        %825 = vmatprep.subr.mxu0 0.0
        %826 = vmatpush1.msra.mxu0 0.0
        %827 = vmatprep.subr.mxu0 0.0
        %828 = vmatpush1.msra.mxu0 0.0
        %829 = vmatprep.subr.mxu0 0.0
        %830 = vmatpush1.msra.mxu0 0.0
        %831 = vmatprep.subr.mxu0 0.0
        %832 = vmatpush1.msra.mxu0 0.0
        %833 = vmatprep.mubr.f32.mxu0 0.0
        %834 = vmatmul.mubr.f32.gmra.mrb[0].mxu0 %v767
        %v835 = vpop.f32.mrb[0].mxu0
        %v836 = vadd.f32 0.0, %v835
        %v837 = vpop.f32.mrb[0].mxu0
        %838 = vdwg.mxu0
        %840 = vrot.lane.b32.xlu0 %v836, 16
        %v841 = vpop.permute.xlu0 %840
        %vm843 = vcmask 195712
        %844 = vst.msk [vmem:[#allocation2] sm:$0xff] %vm843, %v841
        %s845 = scalar_lea.vmem %s252, 16 [#allocation10]
        %846 = vst.msk [vmem:[%s845] sm:$0xff] %vm336, %v762
        %847 = vrot.lane.b32.xlu0 %v332, 104
        %v848 = vpop.permute.xlu0 %847
        %849 = vrot.lane.b32.xlu0 %v329, 72
        %v850 = vpop.permute.xlu0 %849
        %v851 = vsel %vm336, %v848, 0
        %v853 = vsel %vm336, %v850, 0
        %855 = vmatprep.subr.mxu0 0.0
        %856 = vmatpush1.xpose.msra.mxu0 %v853
        %857 = vmatprep.subr.mxu0 0.0
        %858 = vmatpush1.xpose.msra.mxu0 0.0
        %859 = vmatprep.subr.mxu0 0.0
        %860 = vmatpush1.xpose.msra.mxu0 0.0
        %861 = vmatprep.subr.mxu0 0.0
        %862 = vmatpush1.xpose.msra.mxu0 0.0
        %863 = vmatprep.subr.mxu0 0.0
        %864 = vmatpush1.xpose.msra.mxu0 0.0
        %865 = vmatprep.subr.mxu0 0.0
        %866 = vmatpush1.xpose.msra.mxu0 0.0
        %867 = vmatprep.subr.mxu0 0.0
        %868 = vmatpush1.xpose.msra.mxu0 0.0
        %869 = vmatprep.subr.mxu0 0.0
        %870 = vmatpush1.xpose.msra.mxu0 0.0
        %871 = vmatprep.subr.mxu0 0.0
        %872 = vmatpush1.xpose.msra.mxu0 0.0
        %873 = vmatprep.subr.mxu0 0.0
        %874 = vmatpush1.xpose.msra.mxu0 0.0
        %875 = vmatprep.subr.mxu0 0.0
        %876 = vmatpush1.xpose.msra.mxu0 0.0
        %877 = vmatprep.subr.mxu0 0.0
        %878 = vmatpush1.xpose.msra.mxu0 0.0
        %879 = vmatprep.subr.mxu0 0.0
        %880 = vmatpush1.xpose.msra.mxu0 0.0
        %881 = vmatprep.subr.mxu0 0.0
        %882 = vmatpush1.xpose.msra.mxu0 0.0
        %883 = vmatprep.subr.mxu0 0.0
        %884 = vmatpush1.xpose.msra.mxu0 0.0
        %885 = vmatprep.subr.mxu0 0.0
        %886 = vmatpush1.xpose.msra.mxu0 0.0
        %887 = vmatprep.subr.mxu0 0.0
        %888 = vmatpush1.xpose.msra.mxu0 0.0
        %889 = vmatprep.subr.mxu0 0.0
        %890 = vmatpush1.xpose.msra.mxu0 0.0
        %891 = vmatprep.subr.mxu0 0.0
        %892 = vmatpush1.xpose.msra.mxu0 0.0
        %893 = vmatprep.subr.mxu0 0.0
        %894 = vmatpush1.xpose.msra.mxu0 0.0
        %895 = vmatprep.subr.mxu0 0.0
        %896 = vmatpush1.xpose.msra.mxu0 0.0
        %897 = vmatprep.subr.mxu0 0.0
        %898 = vmatpush1.xpose.msra.mxu0 0.0
        %899 = vmatprep.subr.mxu0 0.0
        %900 = vmatpush1.xpose.msra.mxu0 0.0
        %901 = vmatprep.subr.mxu0 0.0
        %902 = vmatpush1.xpose.msra.mxu0 0.0
        %903 = vmatprep.subr.mxu0 0.0
        %904 = vmatpush1.xpose.msra.mxu0 0.0
        %905 = vmatprep.subr.mxu0 0.0
        %906 = vmatpush1.xpose.msra.mxu0 0.0
        %907 = vmatprep.subr.mxu0 0.0
        %908 = vmatpush1.xpose.msra.mxu0 0.0
        %909 = vmatprep.subr.mxu0 0.0
        %910 = vmatpush1.xpose.msra.mxu0 0.0
        %911 = vmatprep.subr.mxu0 0.0
        %912 = vmatpush1.xpose.msra.mxu0 0.0
        %913 = vmatprep.subr.mxu0 0.0
        %914 = vmatpush1.xpose.msra.mxu0 0.0
        %915 = vmatprep.subr.mxu0 0.0
        %916 = vmatpush1.xpose.msra.mxu0 0.0
        %917 = vmatprep.subr.mxu0 0.0
        %918 = vmatpush1.xpose.msra.mxu0 0.0
        %919 = vmatprep.mubr.f32.mxu0 0.0
        %920 = vmatmul.mubr.f32.gmra.mrb[0].mxu0 %v851
        %v921 = vpop.f32.mrb[0].mxu0
        %v922 = vadd.f32 0.0, %v921
        %v923 = vpop.f32.mrb[0].mxu0
        %924 = vdwg.mxu0
        %v925 = vsel %vm336, %v922, -inf
        %926 = vmax.xlane.f32.xlu0 %v925
        %v927 = vpop.xlane.xlu0 %926
        %v928 = vsub.f32 %v922, %v927
        %v929 = vmul.f32 %v928, 1.442695
        %v930 = vpow.pop %v929
        %v931 = vsel %vm336, %v930, 0.0
        %932 = vadd.xlane.f32.xlu0 %v931
        %v933 = vpop.xlane.xlu0 %932
        %v934 = vrcp.pop %v933
        %v935 = vmul.f32 %v930, %v934
        %936 = vrot.lane.b32.xlu0 %v329, 40
        %v937 = vpop.permute.xlu0 %936
        %v940 = vsel %vm336, %v935, 0
        %942 = vmatprep.subr.mxu0 0.0
        %943 = vmatpush1.msra.mxu0 %v937
        %944 = vmatprep.subr.mxu0 0.0
        %945 = vmatpush1.msra.mxu0 0.0
        %946 = vmatprep.subr.mxu0 0.0
        %947 = vmatpush1.msra.mxu0 0.0
        %948 = vmatprep.subr.mxu0 0.0
        %949 = vmatpush1.msra.mxu0 0.0
        %950 = vmatprep.subr.mxu0 0.0
        %951 = vmatpush1.msra.mxu0 0.0
        %952 = vmatprep.subr.mxu0 0.0
        %953 = vmatpush1.msra.mxu0 0.0
        %954 = vmatprep.subr.mxu0 0.0
        %955 = vmatpush1.msra.mxu0 0.0
        %956 = vmatprep.subr.mxu0 0.0
        %957 = vmatpush1.msra.mxu0 0.0
        %958 = vmatprep.subr.mxu0 0.0
        %959 = vmatpush1.msra.mxu0 0.0
        %960 = vmatprep.subr.mxu0 0.0
        %961 = vmatpush1.msra.mxu0 0.0
        %962 = vmatprep.subr.mxu0 0.0
        %963 = vmatpush1.msra.mxu0 0.0
        %964 = vmatprep.subr.mxu0 0.0
        %965 = vmatpush1.msra.mxu0 0.0
        %966 = vmatprep.subr.mxu0 0.0
        %967 = vmatpush1.msra.mxu0 0.0
        %968 = vmatprep.subr.mxu0 0.0
        %969 = vmatpush1.msra.mxu0 0.0
        %970 = vmatprep.subr.mxu0 0.0
        %971 = vmatpush1.msra.mxu0 0.0
        %972 = vmatprep.subr.mxu0 0.0
        %973 = vmatpush1.msra.mxu0 0.0
        %974 = vmatprep.subr.mxu0 0.0
        %975 = vmatpush1.msra.mxu0 0.0
        %976 = vmatprep.subr.mxu0 0.0
        %977 = vmatpush1.msra.mxu0 0.0
        %978 = vmatprep.subr.mxu0 0.0
        %979 = vmatpush1.msra.mxu0 0.0
        %980 = vmatprep.subr.mxu0 0.0
        %981 = vmatpush1.msra.mxu0 0.0
        %982 = vmatprep.subr.mxu0 0.0
        %983 = vmatpush1.msra.mxu0 0.0
        %984 = vmatprep.subr.mxu0 0.0
        %985 = vmatpush1.msra.mxu0 0.0
        %986 = vmatprep.subr.mxu0 0.0
        %987 = vmatpush1.msra.mxu0 0.0
        %988 = vmatprep.subr.mxu0 0.0
        %989 = vmatpush1.msra.mxu0 0.0
        %990 = vmatprep.subr.mxu0 0.0
        %991 = vmatpush1.msra.mxu0 0.0
        %992 = vmatprep.subr.mxu0 0.0
        %993 = vmatpush1.msra.mxu0 0.0
        %994 = vmatprep.subr.mxu0 0.0
        %995 = vmatpush1.msra.mxu0 0.0
        %996 = vmatprep.subr.mxu0 0.0
        %997 = vmatpush1.msra.mxu0 0.0
        %998 = vmatprep.subr.mxu0 0.0
        %999 = vmatpush1.msra.mxu0 0.0
        %1000 = vmatprep.subr.mxu0 0.0
        %1001 = vmatpush1.msra.mxu0 0.0
        %1002 = vmatprep.subr.mxu0 0.0
        %1003 = vmatpush1.msra.mxu0 0.0
        %1004 = vmatprep.subr.mxu0 0.0
        %1005 = vmatpush1.msra.mxu0 0.0
        %1006 = vmatprep.mubr.f32.mxu0 0.0
        %1007 = vmatmul.mubr.f32.gmra.mrb[0].mxu0 %v940
        %v1008 = vpop.f32.mrb[0].mxu0
        %v1009 = vadd.f32 0.0, %v1008
        %v1010 = vpop.f32.mrb[0].mxu0
        %1011 = vdwg.mxu0
        %1013 = vrot.lane.b32.xlu0 %v1009, 24
        %v1014 = vpop.permute.xlu0 %1013
        %vm1016 = vcmask 261312
        %1017 = vst.msk [vmem:[#allocation2] sm:$0xff] %vm1016, %v1014
        %s1018 = scalar_lea.vmem %s252, 24 [#allocation10]
        %1019 = vst.msk [vmem:[%s1018] sm:$0xff] %vm336, %v935
        %v1020 = vld [vmem:[#allocation2] sm:$0xff]
        %v1021 = vld [vmem:[#allocation8] sm:$0xff]
        %v1022 = vld [vmem:[#allocation8 + $0x8] sm:$0xff]
        %v1023 = vld [vmem:[#allocation8 + $0x10] sm:$0xff]
        %v1024 = vld [vmem:[#allocation8 + $0x18] sm:$0xff]
        %v1026 = vsel %vm258, %v1020, 0
        %1028 = vmatprep.subr.mxu0 0.0
        %1029 = vmatpush1.msra.mxu0 %v1021
        %1030 = vmatprep.subr.mxu0 0.0
        %1031 = vmatpush1.msra.mxu0 %v1022
        %1032 = vmatprep.subr.mxu0 0.0
        %1033 = vmatpush1.msra.mxu0 %v1023
        %1034 = vmatprep.subr.mxu0 0.0
        %1035 = vmatpush1.msra.mxu0 %v1024
        %1036 = vmatprep.subr.mxu0 0.0
        %1037 = vmatpush1.msra.mxu0 0.0
        %1038 = vmatprep.subr.mxu0 0.0
        %1039 = vmatpush1.msra.mxu0 0.0
        %1040 = vmatprep.subr.mxu0 0.0
        %1041 = vmatpush1.msra.mxu0 0.0
        %1042 = vmatprep.subr.mxu0 0.0
        %1043 = vmatpush1.msra.mxu0 0.0
        %1044 = vmatprep.subr.mxu0 0.0
        %1045 = vmatpush1.msra.mxu0 0.0
        %1046 = vmatprep.subr.mxu0 0.0
        %1047 = vmatpush1.msra.mxu0 0.0
        %1048 = vmatprep.subr.mxu0 0.0
        %1049 = vmatpush1.msra.mxu0 0.0
        %1050 = vmatprep.subr.mxu0 0.0
        %1051 = vmatpush1.msra.mxu0 0.0
        %1052 = vmatprep.subr.mxu0 0.0
        %1053 = vmatpush1.msra.mxu0 0.0
        %1054 = vmatprep.subr.mxu0 0.0
        %1055 = vmatpush1.msra.mxu0 0.0
        %1056 = vmatprep.subr.mxu0 0.0
        %1057 = vmatpush1.msra.mxu0 0.0
        %1058 = vmatprep.subr.mxu0 0.0
        %1059 = vmatpush1.msra.mxu0 0.0
        %1060 = vmatprep.subr.mxu0 0.0
        %1061 = vmatpush1.msra.mxu0 0.0
        %1062 = vmatprep.subr.mxu0 0.0
        %1063 = vmatpush1.msra.mxu0 0.0
        %1064 = vmatprep.subr.mxu0 0.0
        %1065 = vmatpush1.msra.mxu0 0.0
        %1066 = vmatprep.subr.mxu0 0.0
        %1067 = vmatpush1.msra.mxu0 0.0
        %1068 = vmatprep.subr.mxu0 0.0
        %1069 = vmatpush1.msra.mxu0 0.0
        %1070 = vmatprep.subr.mxu0 0.0
        %1071 = vmatpush1.msra.mxu0 0.0
        %1072 = vmatprep.subr.mxu0 0.0
        %1073 = vmatpush1.msra.mxu0 0.0
        %1074 = vmatprep.subr.mxu0 0.0
        %1075 = vmatpush1.msra.mxu0 0.0
        %1076 = vmatprep.subr.mxu0 0.0
        %1077 = vmatpush1.msra.mxu0 0.0
        %1078 = vmatprep.subr.mxu0 0.0
        %1079 = vmatpush1.msra.mxu0 0.0
        %1080 = vmatprep.subr.mxu0 0.0
        %1081 = vmatpush1.msra.mxu0 0.0
        %1082 = vmatprep.subr.mxu0 0.0
        %1083 = vmatpush1.msra.mxu0 0.0
        %1084 = vmatprep.subr.mxu0 0.0
        %1085 = vmatpush1.msra.mxu0 0.0
        %1086 = vmatprep.subr.mxu0 0.0
        %1087 = vmatpush1.msra.mxu0 0.0
        %1088 = vmatprep.subr.mxu0 0.0
        %1089 = vmatpush1.msra.mxu0 0.0
        %1090 = vmatprep.subr.mxu0 0.0
        %1091 = vmatpush1.msra.mxu0 0.0
        %1092 = vmatprep.mubr.f32.mxu0 0.0
        %1093 = vmatmul.mubr.f32.gmra.mrb[0].mxu0 %v1026
        %v1094 = vpop.f32.mrb[0].mxu0
        %v1095 = vadd.f32 0.0, %v1094
        %v1096 = vpop.f32.mrb[0].mxu0
        %1097 = vdwg.mxu0
        %1098 = vst.msk [vmem:[%s245] sm:$0xff] %vm258, %v1095
        %s1099 = sand.u32 %s102, 1
        %s1100 = scalar_lea.sflag [#allocation5], %s1099
        %s1101 = sand.u32 %s102, 1
        %s1102 = smul.addr %s1101, 8
        %s1103 = scalar_lea.vmem [#allocation9], %s1102
        %s1104 = sand.u32 %s128, 1
        %s1105 = scalar_lea.sflag [#allocation11], %s1104
        %s1106 = sand.u32 %s128, 1
        %s1107 = smul.addr %s1106, 32
        %s1108 = scalar_lea.vmem [#allocation10], %s1107
        // Predicated region
        $region45: #{tpu_custom_call.1} parent=31 // pred_check
          %p1109 = pneg %p112
        $region46: #{tpu_custom_call.1} parent=31 // pred_check_branch
          %1111 = sbr.rel (%p1109) target = $region48
        $region47: #{tpu_custom_call.1} parent=31 // pred_region
          %s1113 = ssub.s32 128, 128
          %1114 = vsyncadd %s1100, %s1113
          %s1115 = smul.addr %s26, 128
          %s1116 = scalar_lea.hbm %s3, %s1115
          %s1118 = sshll.u32 %s1103, 4
          %s1119 = int_to_ptr.vmem [resolvable:$true] %s1118
          %1121 = dma.vmem_to_hbm [thread:$0]  %s1119, 128, %s1116, %s1100
        $region48: #{tpu_custom_call.1} parent=31 // pred_fallthru
          _
        // Predicated region
        $region49: #{tpu_custom_call.1} parent=31 // pred_check
          %p1122 = pneg %p138
        $region50: #{tpu_custom_call.1} parent=31 // pred_check_branch
          %1124 = sbr.rel (%p1122) target = $region52
        $region51: #{tpu_custom_call.1} parent=31 // pred_region
          %s1126 = ssub.s32 512, 512
          %1127 = vsyncadd %s1105, %s1126
          %s1128 = smul.addr %s26, 4
          %s1129 = smul.addr %s1128, 128
          %s1130 = scalar_lea.hbm %s4, %s1129
          %s1131 = sshll.u32 %s1108, 4
          %s1132 = int_to_ptr.vmem [resolvable:$true] %s1131
          %1137 = dma.vmem_to_hbm [thread:$0]  %s1132, 512, %s1130, %s1105, 128, 128, 8
        $region52: #{tpu_custom_call.1} parent=31 // pred_fallthru
          _
      $region32: #{tpu_custom_call.1} parent=5 // pred_fallthru
        _
      %p1138 = scmp.le.s32.totalorder 2, %s21
      // Predicated region
      $region53: #{tpu_custom_call.1} parent=5 // pred_check
        %p1139 = pneg %p1138
      $region54: #{tpu_custom_call.1} parent=5 // pred_check_branch
        %1141 = sbr.rel (%p1139) target = $region56
      $region55: #{tpu_custom_call.1} parent=5 // pred_region
        %s1142 = ssub.s32 %s21, 2
        // Predicated region
        $region57: #{tpu_custom_call.1} parent=55 // pred_check
          %p1143 = pneg %p118
        $region58: #{tpu_custom_call.1} parent=55 // pred_check_branch
          %1145 = sbr.rel (%p1143) target = $region60
        $region59: #{tpu_custom_call.1} parent=55 // pred_region
          %s1146 = sand.u32 %s103, 1
          %s1147 = scalar_lea.sflag [#allocation5], %s1146
          %s1148 = sand.u32 %s103, 1
          %s1149 = smul.addr %s1148, 8
          %s1150 = scalar_lea.vmem [#allocation9], %s1149
          %1151 = dma.done %s1147, 128
        $region60: #{tpu_custom_call.1} parent=55 // pred_fallthru
          _
        // Predicated region
        $region61: #{tpu_custom_call.1} parent=55 // pred_check
          %p1152 = pneg %p144
        $region62: #{tpu_custom_call.1} parent=55 // pred_check_branch
          %1154 = sbr.rel (%p1152) target = $region64
        $region63: #{tpu_custom_call.1} parent=55 // pred_region
          %s1155 = sand.u32 %s129, 1
          %s1156 = scalar_lea.sflag [#allocation11], %s1155
          %s1157 = sand.u32 %s129, 1
          %s1158 = smul.addr %s1157, 32
          %s1159 = scalar_lea.vmem [#allocation10], %s1158
          %1160 = dma.done %s1156, 512
        $region64: #{tpu_custom_call.1} parent=55 // pred_fallthru
          _
      $region56: #{tpu_custom_call.1} parent=5 // pred_fallthru
        _
    $region6: #{tpu_custom_call.1} parent=1 // loop_footer
      %s25 = sadd.s32 1, %s21
    $region7: #{tpu_custom_call.1} parent=1 // loop_footer_branch
      %20 = sbr.rel target = $region3
    $region8: #{tpu_custom_call.1} parent=1 // loop_exit
      _
    %1161 = vsyncpa [#allocation4], 1
    %s1162 = scalar_lea.sflag [#allocation4], 1
    %1163 = vsyncpa %s1162, 1
    %1164 = vsyncpa [#allocation7], 1
    %1165 = vsyncpa [#allocation5], 1
    %s1166 = scalar_lea.sflag [#allocation5], 1
    %1167 = vsyncpa %s1166, 1
    %1168 = vsyncpa [#allocation11], 1
    %s1169 = scalar_lea.sflag [#allocation11], 1
    %1170 = vsyncpa %s1169, 1

</llo_original>
